<compile_context>
chip_gen: v6e
topology: v6e:2x2x1
jax: 0.10.0
libtpu: 0.0.40
codegen_flags: <defaults>
</compile_context>

<pallas_src>
import jax
import jax.numpy as jnp
from jax.experimental import pallas as pl
from jax.experimental.pallas import tpu as pltpu


# ---------------------------------------------------------------------------
# Hardware-aware budgets
# ---------------------------------------------------------------------------
def _vmem_limit_bytes():
    """Generation-aware scoped-VMEM request: ~70% of physical, capped at 96 MiB."""
    cap = None
    try:
        info = pltpu.get_tpu_info()
        cap = int(getattr(info, "vmem_capacity_bytes", 0)) or None
    except Exception:
        cap = None
    if cap is None:
        cap = 64 * 1024 * 1024  # conservative fallback = v7x physical VMEM
    return max(32 * 1024 * 1024, min(int(cap * 0.70), 96 * 1024 * 1024))


def _chip_name():
    try:
        info = pltpu.get_tpu_info()
        for attr in ("chip_version", "version", "generation", "name"):
            v = getattr(info, attr, None)
            if v is not None:
                return str(v).lower()
    except Exception:
        pass
    return ""


def _normalize_compute_dtype(x_dtype):
    """bf16 math on chips with native bf16 VPUs (v6e/v7x); f32 otherwise."""
    if x_dtype == jnp.bfloat16 and "v5" not in _chip_name():
        return jnp.bfloat16
    return jnp.float32


# ---------------------------------------------------------------------------
# Kernels
# ---------------------------------------------------------------------------
def _stats_partial_kernel(x_ref, sum_ref, sumsq_ref):
    """Per-tile partial per-channel sum and sum-of-squares (no carried state)."""
    x = x_ref[...].astype(jnp.float32)                        # (nb, ct, lt)
    s = jnp.sum(jnp.sum(x, axis=2), axis=0, keepdims=True)    # (1, ct) lane-dense
    ss = jnp.sum(jnp.sum(x * x, axis=2), axis=0, keepdims=True)
    sum_ref[...] = s[None, None]                              # (1, 1, 1, ct)
    sumsq_ref[...] = ss[None, None]


def _make_normalize_kernel(compute_dtype):
    def _normalize_kernel(x_ref, scale_ref, shift_ref, out_ref):
        """out = x * scale + shift with per-channel folded affine."""
        x = x_ref[...].astype(compute_dtype)                  # (nb, ct, lt)
        scale = scale_ref[...].astype(compute_dtype)          # (1, ct, 1)
        shift = shift_ref[...].astype(compute_dtype)          # (1, ct, 1)
        out_ref[...] = (x * scale + shift).astype(out_ref.dtype)
    return _normalize_kernel


def _make_fused_kernel(n, l, eps, has_ref, new_coeff, old_coeff):
    """Single-call path: stats + blend + fold + normalize from a resident x."""
    inv_count = 1.0 / float(n * l)

    def kernel(*refs):
        if has_ref:
            x_ref, g_ref, b_ref, rm_ref, rms_ref, out_ref, mean_ref, msq_ref = refs
        else:
            x_ref, g_ref, b_ref, out_ref, mean_ref, msq_ref = refs
        x = x_ref[...].astype(jnp.float32)                    # (N, C, L)
        mean = jnp.sum(jnp.sum(x, axis=2, keepdims=True),
                       axis=0, keepdims=True) * inv_count     # (1, C, 1)
        msq = jnp.sum(jnp.sum(x * x, axis=2, keepdims=True),
                      axis=0, keepdims=True) * inv_count      # (1, C, 1)
        if has_ref:
            mean = new_coeff * mean + old_coeff * rm_ref[...].astype(jnp.float32)
            msq = new_coeff * msq + old_coeff * rms_ref[...].astype(jnp.float32)
        mean_ref[...] = mean
        msq_ref[...] = msq
        var = msq - mean * mean
        inv_std = jax.lax.rsqrt(jnp.maximum(var, 0.0) + eps)
        scale = g_ref[...].astype(jnp.float32) * inv_std      # (1, C, 1)
        shift = b_ref[...].astype(jnp.float32) - mean * scale
        out_ref[...] = (x * scale + shift).astype(out_ref.dtype)

    return kernel


# ---------------------------------------------------------------------------
# Tiling heuristics
# ---------------------------------------------------------------------------
def _choose_tiles(n, c, l, itemsize, budget):
    """Pick (nb, ct, lt): lane tile grown first (bounded by the byte budget),
    channel tile only if needed (multiple of 8 dividing C), batch tile last."""
    budget = max(budget, 8 * 128 * itemsize)

    # --- channel tile: full C unless even a minimal (1, C, lt_min) block blows it
    lt_min = 128 if (l % 128 == 0) else l
    ct = c
    if c * lt_min * itemsize > budget:
        best = None
        for cand in range(8, c, 8):
            if c % cand == 0 and cand * lt_min * itemsize <= budget:
                best = cand
        if best is not None:
            ct = best
        # else: no suitable divisor; keep full C (layout rule needs %8 or ==C)

    # --- lane tile: largest multiple of 128 dividing L that fits the budget
    if l % 128 == 0:
        cap = min(l, max(128, (budget // max(1, ct * itemsize)) // 128 * 128))
        lt = 128
        for cand in range(cap, 127, -128):
            if l % cand == 0:
                lt = cand
                break
    else:
        lt = l  # irregular length: full extent (C-tiling above keeps it bounded)

    # --- batch tile last: largest divisor of N keeping the block under budget
    nb = 1
    for d in range(1, n + 1):
        if n % d == 0 and d * ct * lt * itemsize <= budget:
            nb = d
    return nb, ct, lt


# ---------------------------------------------------------------------------
# Forward pass
# ---------------------------------------------------------------------------
def virtual_batch_norm_1d(x, gamma, beta, ref_mean=None, ref_mean_sq=None,
                          eps=1e-5, *, tile_budget_bytes=None, allow_fused=True):
    """VirtualBatchNorm1d forward. Returns (out, mean, mean_sq) with
    mean/mean_sq shaped (1, C, 1) (float32) like the PyTorch module."""
    n, c, l = x.shape
    itemsize = jnp.dtype(x.dtype).itemsize
    has_ref = (ref_mean is not None) and (ref_mean_sq is not None)
    new_coeff = 1.0 / (n + 1.0) if has_ref else 0.0
    old_coeff = 1.0 - new_coeff if has_ref else 0.0

    vmem_limit = _vmem_limit_bytes()
    tile_budget = tile_budget_bytes if tile_budget_bytes is not None else vmem_limit // 6
    compute_dtype = _normalize_compute_dtype(x.dtype)

    gamma3 = jnp.reshape(gamma, (1, c, 1))
    beta3 = jnp.reshape(beta, (1, c, 1))

    # ---- fast path: whole x (+ output + f32 temp) resident in VMEM -----------
    x_bytes = n * c * l * itemsize
    x_f32_bytes = n * c * l * 4
    fused_fits = (2 * x_bytes + x_f32_bytes + (1 << 20)) <= int(vmem_limit * 0.9)
    if allow_fused and fused_fits:
        args = [x, gamma3, beta3]
        if has_ref:
            args += [jnp.reshape(ref_mean, (1, c, 1)).astype(jnp.float32),
                     jnp.reshape(ref_mean_sq, (1, c, 1)).astype(jnp.float32)]
        out, mean3, msq3 = pl.pallas_call(
            _make_fused_kernel(n, l, float(eps), has_ref, new_coeff, old_coeff),
            out_shape=(jax.ShapeDtypeStruct((n, c, l), x.dtype),
                       jax.ShapeDtypeStruct((1, c, 1), jnp.float32),
                       jax.ShapeDtypeStruct((1, c, 1), jnp.float32)),
            compiler_params=pltpu.CompilerParams(vmem_limit_bytes=vmem_limit),
            cost_estimate=pl.CostEstimate(
                flops=5 * n * c * l + 10 * c,
                transcendentals=c,
                bytes_accessed=2 * n * c * l * itemsize + 16 * c),
        )(*args)
        return out, mean3, msq3

    # ---- tiled path -----------------------------------------------------------
    nb, ct, lt = _choose_tiles(n, c, l, itemsize, tile_budget)
    gn, gc, gl = n // nb, c // ct, l // lt
    grid = (gn, gc, gl)
    n_nl = gn * gl

    # phase 1: per-tile partial stats (all axes parallel -> both v7x TCs stream)
    part_sum, part_sumsq = pl.pallas_call(
        _stats_partial_kernel,
        out_shape=(jax.ShapeDtypeStruct((n_nl, gc, 1, ct), jnp.float32),
                   jax.ShapeDtypeStruct((n_nl, gc, 1, ct), jnp.float32)),
        grid=grid,
        in_specs=[pl.BlockSpec((nb, ct, lt), lambda i, k, j: (i, k, j))],
        out_specs=(pl.BlockSpec((1, 1, 1, ct), lambda i, k, j: (i * gl + j, k, 0, 0)),
                   pl.BlockSpec((1, 1, 1, ct), lambda i, k, j: (i * gl + j, k, 0, 0))),
        compiler_params=pltpu.CompilerParams(
            dimension_semantics=("parallel", "parallel", "parallel"),
            vmem_limit_bytes=vmem_limit),
        cost_estimate=pl.CostEstimate(
            flops=3 * n * c * l,
            transcendentals=0,
            bytes_accessed=n * c * l * itemsize + 8 * n_nl * gc * ct),
    )(x)

    inv_count = 1.0 / float(n * l)
    # tiny wrapper-side reduction of per-tile partials (pairwise-accurate)
    sums = jnp.sum(part_sum, axis=0).reshape(1, c)
    sumsqs = jnp.sum(part_sumsq, axis=0).reshape(1, c)
    mean = sums * inv_count        # (1, C) f32
    mean_sq = sumsqs * inv_count   # (1, C) f32

    if has_ref:
        mean = new_coeff * mean + old_coeff * jnp.reshape(ref_mean, (1, c)).astype(jnp.float32)
        mean_sq = new_coeff * mean_sq + old_coeff * jnp.reshape(ref_mean_sq, (1, c)).astype(jnp.float32)

    # fold normalization + affine into per-channel scale/shift (O(C) work)
    # out = (x - mean) / sqrt(eps + var) * gamma + beta  ==  x * scale + shift
    var = mean_sq - mean * mean
    inv_std = jax.lax.rsqrt(jnp.maximum(var, 0.0) + eps)   # clamp: see header note
    g = jnp.reshape(gamma, (1, c)).astype(jnp.float32)
    b = jnp.reshape(beta, (1, c)).astype(jnp.float32)
    scale = g * inv_std
    shift = b - mean * scale
    scale3 = scale.reshape(1, c, 1).astype(compute_dtype)
    shift3 = shift.reshape(1, c, 1).astype(compute_dtype)

    # phase 2: elementwise normalize/affine (fully parallel grid)
    out = pl.pallas_call(
        _make_normalize_kernel(compute_dtype),
        out_shape=jax.ShapeDtypeStruct((n, c, l), x.dtype),
        grid=grid,
        in_specs=[pl.BlockSpec((nb, ct, lt), lambda i, k, j: (i, k, j)),
                  pl.BlockSpec((1, ct, 1), lambda i, k, j: (0, k, 0)),
                  pl.BlockSpec((1, ct, 1), lambda i, k, j: (0, k, 0))],
        out_specs=pl.BlockSpec((nb, ct, lt), lambda i, k, j: (i, k, j)),
        compiler_params=pltpu.CompilerParams(
            dimension_semantics=("parallel", "parallel", "parallel"),
            vmem_limit_bytes=vmem_limit),
        cost_estimate=pl.CostEstimate(
            flops=2 * n * c * l,
            transcendentals=0,
            bytes_accessed=2 * n * c * l * itemsize + 8 * c),
    )(x, scale3, shift3)

    return out, mean.reshape(1, c, 1), mean_sq.reshape(1, c, 1)


# ---------------------------------------------------------------------------
# Pure-JAX reference (mirrors the PyTorch module) for verification
# ---------------------------------------------------------------------------
def _reference_vbn(x, gamma, beta, ref_mean, ref_mean_sq, eps=1e-5):
    x = x.astype(jnp.float32)
    mean = jnp.mean(jnp.mean(x, axis=2, keepdims=True), axis=0, keepdims=True)
    mean_sq = jnp.mean(jnp.mean(x * x, axis=2, keepdims=True), axis=0, keepdims=True)
    if ref_mean is not None and ref_mean_sq is not None:
        new_coeff = 1.0 / (x.shape[0] + 1.0)
        old_coeff = 1.0 - new_coeff
        mean = new_coeff * mean + old_coeff * ref_mean
        mean_sq = new_coeff * mean_sq + old_coeff * ref_mean_sq
    std = jnp.sqrt(eps + mean_sq - mean ** 2)
    out = (x - mean) / std * gamma + beta
    return out, mean, mean_sq


def _check(pairs, atol, rtol, label):
    for got, exp in pairs:
        if not jnp.allclose(got, exp, atol=atol, rtol=rtol):
            raise AssertionError(f"Pallas VBN output mismatch vs reference ({label})")


if __name__ == "__main__":
    key = jax.random.PRNGKey(0)
    k_x, k_xref, k_g, k_x2, k_xr2, k_x3, k_xr3, k_xb = jax.random.split(key, 8)

    # ---- primary demo: small shapes consistent with the module (fused path) ----
    num_features, batch, length = 4, 2, 16
    gamma = 1.0 + 0.02 * jax.random.normal(k_g, (1, num_features, 1), dtype=jnp.float32)
    beta = jnp.zeros((1, num_features, 1), dtype=jnp.float32)
    x_ref_batch = jax.random.normal(k_xref, (batch, num_features, length), dtype=jnp.float32)
    x = jax.random.normal(k_x, (batch, num_features, length), dtype=jnp.float32)

    out_r, ref_mean, ref_mean_sq = virtual_batch_norm_1d(x_ref_batch, gamma, beta, None, None)
    out, mean, mean_sq = virtual_batch_norm_1d(x, gamma, beta, ref_mean, ref_mean_sq)
    jax.block_until_ready((out_r, ref_mean, ref_mean_sq, out, mean, mean_sq))

    exp_r, exp_rm, exp_rms = _reference_vbn(x_ref_batch, gamma, beta, None, None)
    exp_o, exp_m, exp_ms = _reference_vbn(x, gamma, beta, exp_rm, exp_rms)
    _check([(out_r, exp_r), (ref_mean, exp_rm), (ref_mean_sq, exp_rms),
            (out, exp_o), (mean, exp_m), (mean_sq, exp_ms)], 1e-5, 1e-5, "fused small")

    # ---- tiled path (multi-tile grid over N and L) ----
    n2, c2, l2 = 4, 8, 1024
    gamma2 = 1.0 + 0.02 * jax.random.normal(k_g, (1, c2, 1), dtype=jnp.float32)
    beta2 = jnp.zeros((1, c2, 1), dtype=jnp.float32)
    xr2 = jax.random.normal(k_xr2, (n2, c2, l2), dtype=jnp.float32)
    x2 = jax.random.normal(k_x2, (n2, c2, l2), dtype=jnp.float32)

    o_r2, rm2, rms2 = virtual_batch_norm_1d(xr2, gamma2, beta2, None, None,
                                            tile_budget_bytes=16 * 1024, allow_fused=False)
    o2, m2, ms2 = virtual_batch_norm_1d(x2, gamma2, beta2, rm2, rms2,
                                        tile_budget_bytes=16 * 1024, allow_fused=False)
    jax.block_until_ready((o_r2, rm2, rms2, o2, m2, ms2))

    e_r2, e_rm2, e_rms2 = _reference_vbn(xr2, gamma2, beta2, None, None)
    e_o2, e_m2, e_ms2 = _reference_vbn(x2, gamma2, beta2, e_rm2, e_rms2)
    _check([(o_r2, e_r2), (rm2, e_rm2), (rms2, e_rms2),
            (o2, e_o2), (m2, e_m2), (ms2, e_ms2)], 1e-4, 1e-4, "tiled N/L")

    # ---- tiled path with channel tiling (gc > 1) ----
    n3, c3, l3 = 2, 16, 256
    gamma3 = 1.0 + 0.02 * jax.random.normal(k_g, (1, c3, 1), dtype=jnp.float32)
    beta3 = jnp.zeros((1, c3, 1), dtype=jnp.float32)
    xr3 = jax.random.normal(k_xr3, (n3, c3, l3), dtype=jnp.float32)
    x3 = jax.random.normal(k_x3, (n3, c3, l3), dtype=jnp.float32)

    o_r3, rm3, rms3 = virtual_batch_norm_1d(xr3, gamma3, beta3, None, None,
                                            tile_budget_bytes=4096, allow_fused=False)
    o3, m3, ms3 = virtual_batch_norm_1d(x3, gamma3, beta3, rm3, rms3,
                                        tile_budget_bytes=4096, allow_fused=False)
    jax.block_until_ready((o_r3, rm3, rms3, o3, m3, ms3))

    e_r3, e_rm3, e_rms3 = _reference_vbn(xr3, gamma3, beta3, None, None)
    e_o3, e_m3, e_ms3 = _reference_vbn(x3, gamma3, beta3, e_rm3, e_rms3)
    _check([(o_r3, e_r3), (rm3, e_rm3), (rms3, e_rms3),
            (o3, e_o3), (m3, e_m3), (ms3, e_ms3)], 1e-4, 1e-4, "tiled C")

    # ---- bf16 input path (loose tolerance; exercises low-precision normalize) ----
    nb_, cb_, lb_ = 2, 8, 512
    gammab = 1.0 + 0.02 * jax.random.normal(k_g, (1, cb_, 1), dtype=jnp.float32)
    betab = jnp.zeros((1, cb_, 1), dtype=jnp.float32)
    xb = jax.random.normal(k_xb, (nb_, cb_, lb_), dtype=jnp.float32).astype(jnp.bfloat16)

    o_b, m_b, ms_b = virtual_batch_norm_1d(xb, gammab, betab, None, None,
                                           tile_budget_bytes=4096, allow_fused=False)
    jax.block_until_ready((o_b, m_b, ms_b))
    e_ob, _, _ = _reference_vbn(xb, gammab, betab, None, None)
    if not jnp.allclose(o_b.astype(jnp.float32), e_ob, atol=0.1, rtol=0.1):
        raise AssertionError("Pallas VBN output mismatch vs reference (bf16)")

    print("KERNEL_OK")
</pallas_src>

<mosaic_0001>
module attributes {stable_mosaic.version = 11 : i64} {
  func.func @kernel(%arg0: memref<2x4x16xf32, #tpu.memory_space<vmem>>, %arg1: memref<1x4x1xf32, #tpu.memory_space<vmem>>, %arg2: memref<1x4x1xf32, #tpu.memory_space<vmem>>, %arg3: memref<2x4x16xf32, #tpu.memory_space<vmem>>, %arg4: memref<1x4x1xf32, #tpu.memory_space<vmem>>, %arg5: memref<1x4x1xf32, #tpu.memory_space<vmem>>) attributes {dimension_semantics = [], scalar_prefetch = 0 : i64, scratch_operands = 0 : i64, tpu.core_type = #tpu.core_type<tc>} {
    %c0 = arith.constant 0 : index
    %c0_0 = arith.constant 0 : index
    %c0_1 = arith.constant 0 : index
    %0 = vector.load %arg0[%c0, %c0_0, %c0_1] : memref<2x4x16xf32, #tpu.memory_space<vmem>>, vector<2x4x16xf32>
    %cst = arith.constant dense<0.000000e+00> : vector<2x4xf32>
    %1 = vector.multi_reduction <add>, %0, %cst [2] : vector<2x4x16xf32> to vector<2x4xf32>
    %2 = vector.shape_cast %1 : vector<2x4xf32> to vector<2x4x1xf32>
    %cst_2 = arith.constant dense<0.000000e+00> : vector<4x1xf32>
    %3 = vector.multi_reduction <add>, %2, %cst_2 [0] : vector<2x4x1xf32> to vector<4x1xf32>
    %4 = vector.shape_cast %3 : vector<4x1xf32> to vector<1x4x1xf32>
    %cst_3 = arith.constant 3.125000e-02 : f32
    %5 = vector.broadcast %cst_3 : f32 to vector<1x4x1xf32>
    %6 = arith.mulf %4, %5 : vector<1x4x1xf32>
    %7 = arith.mulf %0, %0 : vector<2x4x16xf32>
    %cst_4 = arith.constant dense<0.000000e+00> : vector<2x4xf32>
    %8 = vector.multi_reduction <add>, %7, %cst_4 [2] : vector<2x4x16xf32> to vector<2x4xf32>
    %9 = vector.shape_cast %8 : vector<2x4xf32> to vector<2x4x1xf32>
    %cst_5 = arith.constant dense<0.000000e+00> : vector<4x1xf32>
    %10 = vector.multi_reduction <add>, %9, %cst_5 [0] : vector<2x4x1xf32> to vector<4x1xf32>
    %11 = vector.shape_cast %10 : vector<4x1xf32> to vector<1x4x1xf32>
    %cst_6 = arith.constant 3.125000e-02 : f32
    %12 = vector.broadcast %cst_6 : f32 to vector<1x4x1xf32>
    %13 = arith.mulf %11, %12 : vector<1x4x1xf32>
    %c0_7 = arith.constant 0 : index
    %c0_8 = arith.constant 0 : index
    %c0_9 = arith.constant 0 : index
    %14 = vector.load %arg4[%c0_7, %c0_8, %c0_9] : memref<1x4x1xf32, #tpu.memory_space<vmem>>, vector<1x4x1xf32>
    tpu.vector_store %arg4[%c0_7, %c0_8, %c0_9], %6 {strides = array<i32>} : memref<1x4x1xf32, #tpu.memory_space<vmem>>, vector<1x4x1xf32>,
    %c0_10 = arith.constant 0 : index
    %c0_11 = arith.constant 0 : index
    %c0_12 = arith.constant 0 : index
    %15 = vector.load %arg5[%c0_10, %c0_11, %c0_12] : memref<1x4x1xf32, #tpu.memory_space<vmem>>, vector<1x4x1xf32>
    tpu.vector_store %arg5[%c0_10, %c0_11, %c0_12], %13 {strides = array<i32>} : memref<1x4x1xf32, #tpu.memory_space<vmem>>, vector<1x4x1xf32>,
    %16 = arith.mulf %6, %6 : vector<1x4x1xf32>
    %17 = arith.subf %13, %16 : vector<1x4x1xf32>
    %cst_13 = arith.constant 0.000000e+00 : f32
    %18 = vector.broadcast %cst_13 : f32 to vector<1x4x1xf32>
    %19 = arith.maximumf %17, %18 : vector<1x4x1xf32>
    %cst_14 = arith.constant 9.99999974E-6 : f32
    %20 = vector.broadcast %cst_14 : f32 to vector<1x4x1xf32>
    %21 = arith.addf %19, %20 : vector<1x4x1xf32>
    %22 = math.rsqrt %21 : vector<1x4x1xf32>
    %c0_15 = arith.constant 0 : index
    %c0_16 = arith.constant 0 : index
    %c0_17 = arith.constant 0 : index
    %23 = vector.load %arg1[%c0_15, %c0_16, %c0_17] : memref<1x4x1xf32, #tpu.memory_space<vmem>>, vector<1x4x1xf32>
    %24 = arith.mulf %23, %22 : vector<1x4x1xf32>
    %c0_18 = arith.constant 0 : index
    %c0_19 = arith.constant 0 : index
    %c0_20 = arith.constant 0 : index
    %25 = vector.load %arg2[%c0_18, %c0_19, %c0_20] : memref<1x4x1xf32, #tpu.memory_space<vmem>>, vector<1x4x1xf32>
    %26 = arith.mulf %6, %24 : vector<1x4x1xf32>
    %27 = arith.subf %25, %26 : vector<1x4x1xf32>
    %28 = vector.broadcast %24 : vector<1x4x1xf32> to vector<2x4x16xf32>
    %29 = arith.mulf %0, %28 : vector<2x4x16xf32>
    %30 = vector.broadcast %27 : vector<1x4x1xf32> to vector<2x4x16xf32>
    %31 = arith.addf %29, %30 : vector<2x4x16xf32>
    %c0_21 = arith.constant 0 : index
    %c0_22 = arith.constant 0 : index
    %c0_23 = arith.constant 0 : index
    %32 = vector.load %arg3[%c0_21, %c0_22, %c0_23] : memref<2x4x16xf32, #tpu.memory_space<vmem>>, vector<2x4x16xf32>
    tpu.vector_store %arg3[%c0_21, %c0_22, %c0_23], %31 {strides = array<i32>} : memref<2x4x16xf32, #tpu.memory_space<vmem>>, vector<2x4x16xf32>,
    return
  }
}

</mosaic_0001>

<llo_original>
// kernel: tpu_custom_call.1
$region0: #{tpu_custom_call.1}
  #allocation0 [shape = 'u32[]', space=smem, size = 0x4, offset = 0x4, fixed_abs, tag = 'smem constant byte address 0x4 - core index']
  #allocation1 [shape = 'u32[144,128]{1,0:T(1,128)}', space=vmem, size = 0x12000, scoped, tag = 'internal scratch']
  %s0 = inlined_call_operand.vmem [shape: f32[2,4,16], index: 0, kind: input, shape index: {}]
  %s1 = inlined_call_operand.vmem [shape: f32[1,4,1], index: 1, kind: input, shape index: {}]
  %s2 = inlined_call_operand.vmem [shape: f32[1,4,1], index: 2, kind: input, shape index: {}]
  %s3 = inlined_call_operand.hbm [shape: f32[2,4,16], index: 3, kind: output, shape index: {0}]
  %s4 = inlined_call_operand.vmem [shape: f32[1,4,1], index: 4, kind: output, shape index: {1}]
  %s5 = inlined_call_operand.vmem [shape: f32[1,4,1], index: 5, kind: output, shape index: {2}]
  %6 = xla_tuple %s3, %s4, %s5
  %s7 = sld [smem:[#allocation0]]
  $region38: #{tpu_custom_call.1} parent=0
    _
  %s9 = ssub.s32 1, %s7
  %s10 = scalar_select 0, %s9, %s7
  $region1: #{tpu_custom_call.1} parent=0
    #allocation2 [shape = 'u8[4096]{0}', space=vmem, size = 0x1000, scoped, tag = 'output window, operand 0, single buffered']
    #allocation3 [shape = 's32[1]{0}', space=sflag, size = 0x4, scoped, tag = 'scoped memory for tpu_custom_call.1']
    %11 = vsyncpa [#allocation3], 0
    // Predicated region
    $region2: #{tpu_custom_call.1} parent=1 // pred_check
      _
    $region3: #{tpu_custom_call.1} parent=1 // pred_check_branch
      %13 = sbr.rel (0) target = $region5
    $region4: #{tpu_custom_call.1} parent=1 // pred_region
      _
    $region5: #{tpu_custom_call.1} parent=1 // pred_fallthru
      _
    // Predicated region
    $region6: #{tpu_custom_call.1} parent=1 // pred_check
      _
    $region7: #{tpu_custom_call.1} parent=1 // pred_check_branch
      %15 = sbr.rel (0) target = $region9
    $region8: #{tpu_custom_call.1} parent=1 // pred_region
      _
    $region9: #{tpu_custom_call.1} parent=1 // pred_fallthru
      _
    // Predicated region
    $region10: #{tpu_custom_call.1} parent=1 // pred_check
      _
    $region11: #{tpu_custom_call.1} parent=1 // pred_check_branch
      %17 = sbr.rel (0) target = $region13
    $region12: #{tpu_custom_call.1} parent=1 // pred_region
      _
    $region13: #{tpu_custom_call.1} parent=1 // pred_fallthru
      _
    %v18 = vld [vmem:[%s0] sm:$0xf]
    %v19 = vld [vmem:[%s0 + $0x4] sm:$0xf]
    %vm20 = vcmask 125952
    %v21 = vsel %vm20, %v18, 0.0
    %22 = vadd.xlane.f32.xlu0 %v21
    %v23 = vpop.xlane.xlu0 %22
    %v24 = vsel %vm20, %v19, 0.0
    %25 = vadd.xlane.f32.xlu0 %v24
    %v26 = vpop.xlane.xlu0 %25
    %vm27 = vcmask 1043456
    %v28 = vsel %vm27, %v23, 0.0
    %v29 = vsel %vm27, %v26, 0.0
    %v30 = vadd.f32 %v28, %v29
    %v31 = vmul.f32 %v30, 0.03125
    %v32 = vmul.f32 %v18, %v18
    %v33 = vmul.f32 %v19, %v19
    %v34 = vsel %vm20, %v32, 0.0
    %35 = vadd.xlane.f32.xlu0 %v34
    %v36 = vpop.xlane.xlu0 %35
    %v37 = vsel %vm20, %v33, 0.0
    %38 = vadd.xlane.f32.xlu0 %v37
    %v39 = vpop.xlane.xlu0 %38
    %v40 = vsel %vm27, %v36, 0.0
    %v41 = vsel %vm27, %v39, 0.0
    %v42 = vadd.f32 %v40, %v41
    %v43 = vmul.f32 %v42, 0.03125
    %vm44 = vcmask 3072
    %45 = vst.msk [vmem:[%s4] sm:$0xf] %vm44, %v31
    %46 = vst.msk [vmem:[%s5] sm:$0xf] %vm44, %v43
    %v47 = vmul.f32 %v31, %v31
    %v48 = vsub.f32 %v43, %v47
    %v49 = vmax.f32 %v48, 0.0
    %v50 = vadd.f32 %v49, 1e-05
    %v51 = vrsqrt.pop %v50
    %v52 = vld [vmem:[%s1] sm:$0xf]
    %v53 = vmul.f32 %v52, %v51
    %v54 = vld [vmem:[%s2] sm:$0xf]
    %v55 = vmul.f32 %v31, %v53
    %v56 = vsub.f32 %v54, %v55
    %58 = vset.pattern.permute.xlu0 0
    %59 = vperm.xlu0 %58, %v53
    %v60 = vpop.permute.xlu0 %59
    %v62 = vmul.f32 %v18, %v60
    %v63 = vmul.f32 %v19, %v60
    %65 = vset.pattern.permute.xlu0 0
    %66 = vperm.xlu0 %65, %v56
    %v67 = vpop.permute.xlu0 %66
    %v69 = vadd.f32 %v62, %v67
    %v70 = vadd.f32 %v63, %v67
    %71 = vst.msk [vmem:[#allocation2] sm:$0xf] %vm20, %v69
    %72 = vst.msk [vmem:[#allocation2 + $0x4] sm:$0xf] %vm20, %v70
    // Predicated region
    $region14: #{tpu_custom_call.1} parent=1 // pred_check
      _
    $region15: #{tpu_custom_call.1} parent=1 // pred_check_branch
      %74 = sbr.rel (0) target = $region17
    $region16: #{tpu_custom_call.1} parent=1 // pred_region
      %s76 = ssub.s32 128, 128
      %77 = vsyncadd [#allocation3], %s76
      %s78 = sshll.u32 [#allocation2], 4
      %s79 = int_to_ptr.vmem [resolvable:$true] %s78
      %84 = dma.vmem_to_hbm [thread:$0]  %s79, 128, %s3, [#allocation3], 64, 64, 4
    $region17: #{tpu_custom_call.1} parent=1 // pred_fallthru
      _
    // Predicated region
    $region18: #{tpu_custom_call.1} parent=1 // pred_check
      _
    $region19: #{tpu_custom_call.1} parent=1 // pred_check_branch
      %86 = sbr.rel (0) target = $region21
    $region20: #{tpu_custom_call.1} parent=1 // pred_region
      _
    $region21: #{tpu_custom_call.1} parent=1 // pred_fallthru
      _
    // Predicated region
    $region22: #{tpu_custom_call.1} parent=1 // pred_check
      _
    $region23: #{tpu_custom_call.1} parent=1 // pred_check_branch
      %88 = sbr.rel (0) target = $region25
    $region24: #{tpu_custom_call.1} parent=1 // pred_region
      _
    $region25: #{tpu_custom_call.1} parent=1 // pred_fallthru
      _
    // Predicated region
    $region26: #{tpu_custom_call.1} parent=1 // pred_check
      _
    $region27: #{tpu_custom_call.1} parent=1 // pred_check_branch
      %90 = sbr.rel (0) target = $region29
    $region28: #{tpu_custom_call.1} parent=1 // pred_region
      %91 = dma.done [#allocation3], 128
    $region29: #{tpu_custom_call.1} parent=1 // pred_fallthru
      _
    // Predicated region
    $region30: #{tpu_custom_call.1} parent=1 // pred_check
      _
    $region31: #{tpu_custom_call.1} parent=1 // pred_check_branch
      %93 = sbr.rel (0) target = $region33
    $region32: #{tpu_custom_call.1} parent=1 // pred_region
      _
    $region33: #{tpu_custom_call.1} parent=1 // pred_fallthru
      _
    // Predicated region
    $region34: #{tpu_custom_call.1} parent=1 // pred_check
      _
    $region35: #{tpu_custom_call.1} parent=1 // pred_check_branch
      %95 = sbr.rel (0) target = $region37
    $region36: #{tpu_custom_call.1} parent=1 // pred_region
      _
    $region37: #{tpu_custom_call.1} parent=1 // pred_fallthru
      _
    %96 = vsyncpa [#allocation3], 1

</llo_original>
